<compile_context>
chip_gen: v5e
topology: v5e:2x2
jax: 0.10.0
libtpu: 0.0.40
codegen_flags: <defaults>
</compile_context>

<pallas_src>
import jax
import jax.numpy as jnp
from jax import lax
from jax.experimental import pallas as pl
from jax.experimental.pallas import tpu as pltpu


def _s4adapter_kernel(tok_ref, emb_ref, wt_ref, b_ref, out_ref, x_buf):
    # tok_ref: (Np,)    int32 SMEM (scalar prefetch), mask folded in (-1 = pad)
    # emb_ref: (Ve, Dp) f32   resident VMEM embedding table (zero padded)
    # wt_ref : (Dp, Vp) bf16  resident VMEM predict.weight.T (zero padded)
    # b_ref  : (1, Vp)  f32   resident VMEM predict bias
    # out_ref: (TN, Vp) f32   logits tile
    # x_buf  : (TN, Dp) f32   VMEM scratch: gathered embedding rows
    i = pl.program_id(0)
    tn = out_ref.shape[0]
    ve = emb_ref.shape[0]

    # Stage 1: row gather emb[tok] -> x_buf (masked / out-of-range rows -> 0).
    def gather_row(r, carry):
        tid = tok_ref[i * tn + r]
        valid = jnp.logical_and(tid >= 0, tid < ve).astype(jnp.float32)
        idx = jnp.clip(tid, 0, ve - 1)
        x_buf[pl.ds(r, 1), :] = emb_ref[pl.ds(idx, 1), :] * valid
        return carry

    lax.fori_loop(0, tn, gather_row, 0)

    # Stage 2: single small-K MXU matmul, bf16 operands, f32 accumulate.
    x = x_buf[...].astype(jnp.bfloat16)
    logits = jnp.dot(x, wt_ref[...], preferred_element_type=jnp.float32)
    out_ref[...] = logits + b_ref[...]


def s4adapter_forward(tokens, mask, emb_table, predict_w, predict_b,
                      *, row_tile=256):
    """tokens (B,S) int, mask (B,S) bool or None, emb_table (V,D),
    predict_w (V,D) [PyTorch nn.Linear layout], predict_b (V,).
    Returns logits (B, S, V) float32."""
    B, S = tokens.shape
    V, D = emb_table.shape
    N = B * S

    if mask is None:
        mask = jnp.ones((B, S), dtype=bool)

    Vp = pl.cdiv(V, 128) * 128        # lane-dense output vocab
    Dp = pl.cdiv(D, 128) * 128        # lane-dense / MXU contraction dim
    Ve = pl.cdiv(V, 8) * 8            # sublane-aligned embedding rows

    # Fold mask into token ids (sentinel -1 => zero embedding row).
    tok = jnp.where(mask, tokens.astype(jnp.int32), jnp.int32(-1)).reshape(N)

    # Row tiling: >=2 tiles so both v7x TensorCores engage and output DMAs
    # double-buffer; otherwise default to large tiles (per-step ~0.35us).
    TN = min(row_tile, max(8, pl.cdiv(pl.cdiv(N, 2), 8) * 8))
    Np = pl.cdiv(N, TN) * TN
    if Np != N:
        tok = jnp.pad(tok, (0, Np - N), constant_values=-1)

    # Padded parameters. Predict weight goes in as bf16 (native MXU rate).
    emb = jnp.pad(emb_table.astype(jnp.float32), ((0, Ve - V), (0, Dp - D)))
    wt = jnp.pad(predict_w.astype(jnp.float32).T,
                 ((0, Dp - D), (0, Vp - V))).astype(jnp.bfloat16)
    bias = jnp.pad(predict_b.astype(jnp.float32), (0, Vp - V)).reshape(1, Vp)

    grid = (Np // TN,)

    cost = pl.CostEstimate(
        flops=2 * Np * Dp * Vp,
        transcendentals=0,
        bytes_accessed=(Np * 4 + Ve * Dp * 4 + Dp * Vp * 2 + Vp * 4
                        + Np * Vp * 4),
    )

    # VMEM working set (pipeliner double-buffers the blocked operands).
    vmem_bytes = (2 * TN * Vp * 4      # out tiles
                  + 2 * Ve * Dp * 4    # emb table buffers
                  + 2 * Dp * Vp * 2    # predict weight buffers (bf16)
                  + 2 * Vp * 4         # bias
                  + TN * Dp * 4)       # gather scratch
    vmem_limit = int(min(96 * 2 ** 20, max(32 * 2 ** 20, 2 * vmem_bytes)))

    logits = pl.pallas_call(
        _s4adapter_kernel,
        out_shape=jax.ShapeDtypeStruct((Np, Vp), jnp.float32),
        grid_spec=pltpu.PrefetchScalarGridSpec(
            num_scalar_prefetch=1,
            grid=grid,
            in_specs=[
                pl.BlockSpec((Ve, Dp), lambda i, tok: (0, 0)),   # emb (resident)
                pl.BlockSpec((Dp, Vp), lambda i, tok: (0, 0)),   # W.T (resident)
                pl.BlockSpec((1, Vp), lambda i, tok: (0, 0)),    # bias (resident)
            ],
            out_specs=pl.BlockSpec((TN, Vp), lambda i, tok: (i, 0)),
            scratch_shapes=[pltpu.VMEM((TN, Dp), jnp.float32)],
        ),
        compiler_params=pltpu.CompilerParams(
            dimension_semantics=("parallel",),   # row tiles are independent
            vmem_limit_bytes=vmem_limit,
        ),
        cost_estimate=cost,
    )(tok, emb, wt, bias)

    # Drop row / vocab padding.
    return logits[:N, :V].reshape(B, S, V)


if __name__ == "__main__":
    # Small shapes consistent with the module: s4config['d_model']=32, vocab=32.
    B, S = 2, 8
    vocab_size = 32
    d_model = 32

    key = jax.random.PRNGKey(0)
    k_tok, k_mask, k_emb, k_w, k_b = jax.random.split(key, 5)

    tokens = jax.random.randint(k_tok, (B, S), 0, vocab_size, dtype=jnp.int32)
    # deterministic mask: last 2 positions of batch 1 are padding
    mask = jnp.ones((B, S), dtype=bool).at[1, -2:].set(False)

    # Deterministic parameter init (matching nn.Embedding / nn.Linear shapes):
    emb_table = jax.random.normal(k_emb, (vocab_size, d_model), jnp.float32)
    bound = 1.0 / (d_model ** 0.5)
    predict_w = jax.random.uniform(k_w, (vocab_size, d_model), jnp.float32,
                                   -bound, bound)
    predict_b = jax.random.uniform(k_b, (vocab_size,), jnp.float32,
                                   -bound, bound)

    out = s4adapter_forward(tokens, mask, emb_table, predict_w, predict_b)
    out = jax.block_until_ready(out)

    # Cross-check against a plain-JAX f32 reference of the same semantics
    # (kernel uses bf16 MXU operands -> slightly looser tolerance).
    x_ref = emb_table[tokens] * mask[..., None].astype(jnp.float32)
    ref = x_ref @ predict_w.T + predict_b
    assert out.shape == (B, S, vocab_size)
    assert jnp.allclose(out, ref, atol=2e-2, rtol=2e-2), \
        float(jnp.max(jnp.abs(out - ref)))

    print("KERNEL_OK")
</pallas_src>

<mosaic_0001>
module attributes {stable_mosaic.version = 11 : i64} {
  func.func @_s4adapter_kernel(%arg0: i32, %arg1: memref<16xi32, #tpu.memory_space<smem>>, %arg2: memref<32x128xf32, #tpu.memory_space<vmem>>, %arg3: memref<128x128xbf16, #tpu.memory_space<vmem>>, %arg4: memref<1x128xf32, #tpu.memory_space<vmem>>, %arg5: memref<8x128xf32, #tpu.memory_space<vmem>>, %arg6: memref<8x128xf32, #tpu.memory_space<vmem>>) attributes {dimension_semantics = [#tpu.dimension_semantics<parallel>], iteration_bounds = array<i64: 2>, scalar_prefetch = 1 : i64, scratch_operands = 1 : i64, tpu.core_type = #tpu.core_type<tc>, window_params = [{pipeline_mode = #tpu.pipeline_mode<synchronous>, transform_indices = @transform_0, window_bounds = array<i64: 32, 128>}, {pipeline_mode = #tpu.pipeline_mode<synchronous>, transform_indices = @transform_1, window_bounds = array<i64: 128, 128>}, {pipeline_mode = #tpu.pipeline_mode<synchronous>, transform_indices = @transform_2, window_bounds = array<i64: 1, 128>}, {transform_indices = @transform_3, window_bounds = array<i64: 8, 128>}]} {
    %c0_i32 = arith.constant 0 : i32
    %c8_i32 = arith.constant 8 : i32
    %0 = arith.addi %c0_i32, %c8_i32 : i32
    %c1_i32 = arith.constant 1 : i32
    scf.for %arg7 = %c0_i32 to %0 step %c1_i32  : i32 {
      %c8_i32_8 = arith.constant 8 : i32
      %9 = arith.muli %arg0, %c8_i32_8 : i32
      %10 = arith.addi %9, %arg7 : i32
      %11 = arith.index_cast %10 : i32 to index
      %12 = memref.load %arg1[%11] : memref<16xi32, #tpu.memory_space<smem>>
      %c0_i32_9 = arith.constant 0 : i32
      %13 = arith.cmpi sge, %12, %c0_i32_9 : i32
      %c32_i32 = arith.constant 32 : i32
      %14 = arith.cmpi slt, %12, %c32_i32 : i32
      %15 = arith.andi %13, %14 : i1
      %16 = arith.extui %15 : i1 to i32
      %17 = arith.sitofp %16 : i32 to f32
      %c0_i32_10 = arith.constant 0 : i32
      %c31_i32 = arith.constant 31 : i32
      %18 = arith.maxsi %c0_i32_10, %12 : i32
      %19 = arith.minsi %c31_i32, %18 : i32
      %20 = arith.index_cast %19 : i32 to index
      %c0_11 = arith.constant 0 : index
      %21 = vector.load %arg2[%20, %c0_11] : memref<32x128xf32, #tpu.memory_space<vmem>>, vector<1x128xf32>
      %22 = vector.broadcast %17 : f32 to vector<1x128xf32>
      %23 = arith.mulf %21, %22 : vector<1x128xf32>
      %24 = arith.index_cast %arg7 : i32 to index
      %c0_12 = arith.constant 0 : index
      %25 = vector.load %arg6[%24, %c0_12] : memref<8x128xf32, #tpu.memory_space<vmem>>, vector<1x128xf32>
      tpu.vector_store %arg6[%24, %c0_12], %23 {strides = array<i32>} : memref<8x128xf32, #tpu.memory_space<vmem>>, vector<1x128xf32>,
    }
    %c8_i32_0 = arith.constant 8 : i32
    %c0 = arith.constant 0 : index
    %c0_1 = arith.constant 0 : index
    %1 = vector.load %arg6[%c0, %c0_1] : memref<8x128xf32, #tpu.memory_space<vmem>>, vector<8x128xf32>
    %2 = arith.truncf %1 : vector<8x128xf32> to vector<8x128xbf16>
    %c0_2 = arith.constant 0 : index
    %c0_3 = arith.constant 0 : index
    %3 = vector.load %arg3[%c0_2, %c0_3] : memref<128x128xbf16, #tpu.memory_space<vmem>>, vector<128x128xbf16>
    %cst = arith.constant dense<0.000000e+00> : vector<8x128xf32>
    %4 = tpu.matmul %2, %3, %cst {dimension_numbers = #tpu.dot_dimension_numbers<[1], [0], [0], [1], [0, 0, 1, 1], [], []>} : vector<8x128xbf16>, vector<128x128xbf16>, vector<8x128xf32> -> vector<8x128xf32>
    %c0_4 = arith.constant 0 : index
    %c0_5 = arith.constant 0 : index
    %5 = vector.load %arg4[%c0_4, %c0_5] : memref<1x128xf32, #tpu.memory_space<vmem>>, vector<1x128xf32>
    %6 = vector.broadcast %5 : vector<1x128xf32> to vector<8x128xf32>
    %7 = arith.addf %4, %6 : vector<8x128xf32>
    %c0_6 = arith.constant 0 : index
    %c0_7 = arith.constant 0 : index
    %8 = vector.load %arg5[%c0_6, %c0_7] : memref<8x128xf32, #tpu.memory_space<vmem>>, vector<8x128xf32>
    tpu.vector_store %arg5[%c0_6, %c0_7], %7 {strides = array<i32>} : memref<8x128xf32, #tpu.memory_space<vmem>>, vector<8x128xf32>,
    return
  }
  func.func @transform_0(%arg0: i32, %arg1: memref<16xi32, #tpu.memory_space<smem>>) -> (i32, i32) {
    %c0_i32 = arith.constant 0 : i32
    %c0_i32_0 = arith.constant 0 : i32
    %c0_i32_1 = arith.constant 0 : i32
    return %c0_i32, %c0_i32_0 : i32, i32
  }
  func.func @transform_1(%arg0: i32, %arg1: memref<16xi32, #tpu.memory_space<smem>>) -> (i32, i32) {
    %c0_i32 = arith.constant 0 : i32
    %c0_i32_0 = arith.constant 0 : i32
    %c0_i32_1 = arith.constant 0 : i32
    return %c0_i32, %c0_i32_0 : i32, i32
  }
  func.func @transform_2(%arg0: i32, %arg1: memref<16xi32, #tpu.memory_space<smem>>) -> (i32, i32) {
    %c0_i32 = arith.constant 0 : i32
    %c0_i32_0 = arith.constant 0 : i32
    %c0_i32_1 = arith.constant 0 : i32
    return %c0_i32, %c0_i32_0 : i32, i32
  }
  func.func @transform_3(%arg0: i32, %arg1: memref<16xi32, #tpu.memory_space<smem>>) -> (i32, i32) {
    %c0_i32 = arith.constant 0 : i32
    %c0_i32_0 = arith.constant 0 : i32
    return %arg0, %c0_i32 : i32, i32
  }
}

</mosaic_0001>

<llo_original>
// kernel: tpu_custom_call.1
$region0: #{tpu_custom_call.1}
  #allocation0 [shape = 'u32[]', space=smem, size = 0x4, offset = 0x4, fixed_abs, tag = 'smem constant byte address 0x4 - core index']
  #allocation1 [shape = 'u32[72,128]{1,0:T(1,128)}', space=vmem, size = 0x9000, scoped, tag = 'internal scratch']
  #allocation2 [shape = 'f32[8,128]{1,0:T(8,128)}', space=vmem, size = 0x1000, scoped, tag = 'scratch operand']
  #allocation3 [shape = 's32[1]{0}', space=sflag, size = 0x4, scoped, tag = 'scoped memory for tpu_custom_call.1']
  #allocation4 [shape = 'u8[512]{0}', space=smem, size = 0x200, scoped, tag = 'prefetched SMEM operand 0']
  %s0 = inlined_call_operand.hbm [shape: s32[16], index: 0, kind: input, shape index: {}]
  %s1 = inlined_call_operand.hbm [shape: f32[32,128], index: 1, kind: input, shape index: {}]
  %s2 = inlined_call_operand.hbm [shape: bf16[128,128], index: 2, kind: input, shape index: {}]
  %s3 = inlined_call_operand.vmem [shape: f32[1,128], index: 3, kind: input, shape index: {}]
  %s4 = inlined_call_operand.hbm [shape: f32[16,128], index: 4, kind: output, shape index: {}]
  %s5 = sld [smem:[#allocation0]]
  $region60: #{tpu_custom_call.1} parent=0
    _
  %s7 = ssub.s32 1, %s5
  %s8 = scalar_select 0, %s7, %s5
  %s10 = sshll.u32 %s0, 4
  %s11 = int_to_ptr.hbm [resolvable:$true] %s10
  %13 = dma.hbm_to_smem %s11, 16, [#allocation4], [#allocation3]
  %15 = dma.done [#allocation3], 16
  %16 = sfence
  $region1: #{tpu_custom_call.1} parent=0
    #allocation5 [shape = 'u8[16384]{0}', space=vmem, size = 0x4000, scoped, tag = 'input window, operand 1, single buffered']
    #allocation6 [shape = 's32[2]{0}', space=sflag, size = 0x8, scoped, tag = 'scoped memory for tpu_custom_call.1']
    #allocation7 [shape = 's32[2]{0}', space=sflag, size = 0x8, scoped, tag = 'scoped memory for tpu_custom_call.1']
    #allocation8 [shape = 'u8[32768]{0}', space=vmem, size = 0x8000, scoped, tag = 'input window, operand 2, single buffered']
    #allocation9 [shape = 's32[1]{0}', space=sflag, size = 0x4, scoped, tag = 'scoped memory for tpu_custom_call.1']
    #allocation10 [shape = 'u8[8192]{0}', space=vmem, size = 0x2000, scoped, tag = 'output window, operand 0']
    %17 = vsyncpa [#allocation6], 0
    %18 = vsyncpa [#allocation9], 0
    %19 = vsyncpa [#allocation7], 0
    %s20 = scalar_lea.sflag [#allocation7], 1
    %21 = vsyncpa %s20, 0
    loop: start=0, step=1, limit=4
    $region2: #{tpu_custom_call.1} parent=1 // loop_pre_header
      _
    $region3: #{tpu_custom_call.1} parent=1 // loop_header
      %s23 = sphi 0, %s27
      %p24 = scmp.ge.s32.totalorder %s23, 4
      %s31 = sphi 0, %s31
      %s33 = sphi 0, %s31
      %s34 = sphi 0, %s33
      %s48 = sphi 0, %s34
      %s52 = sphi 0, %s52
      %s54 = sphi 0, %s52
      %s55 = sphi 0, %s54
      %s69 = sphi 0, %s55
      %s73 = sphi 0, %s73
      %s75 = sphi 0, %s73
      %s76 = sphi 0, %s75
      %s90 = sphi 0, %s76
      %s96 = sphi 0, %s98
      %s99 = sphi 0, %s96
      %s100 = sphi 0, %s99
      %s116 = sphi 0, %s100
    $region4: #{tpu_custom_call.1} parent=1 // loop_header_branch
      %26 = sbr.rel (%p24) target = $region8
    $region5: #{tpu_custom_call.1} parent=1 // loop_body
      %s28 = ssub.s32 %s23, 1
      %s29 = ssub.s32 %s23, 2
      %s30 = sadd.s32 %s23, 1
      %s32 = sadd.s32 %s31, 1
      %p35 = scmp.eq.s32.totalorder %s23, 1
      %p36 = scmp.ne.s32.totalorder %s31, %s33
      %p37 = scmp.eq.s32.totalorder %s23, 0
      %p38 = por %p36, %p37
      %p39 = scmp.ne.s32.totalorder %s31, %s33
      %p40 = scmp.eq.s32.totalorder %s28, 1
      %p41 = por %p39, %p40
      %p42 = scmp.ne.s32.totalorder %s33, %s34
      %p43 = scmp.eq.s32.totalorder %s28, 0
      %p44 = por %p42, %p43
      %p45 = scmp.ne.s32.totalorder %s33, %s34
      %p46 = scmp.eq.s32.totalorder %s29, 1
      %p47 = por %p45, %p46
      %p49 = scmp.ne.s32.totalorder %s34, %s48
      %p50 = scmp.eq.s32.totalorder %s29, 0
      %p51 = por %p49, %p50
      %s53 = sadd.s32 %s52, 1
      %p56 = scmp.eq.s32.totalorder %s23, 1
      %p57 = scmp.ne.s32.totalorder %s52, %s54
      %p58 = scmp.eq.s32.totalorder %s23, 0
      %p59 = por %p57, %p58
      %p60 = scmp.ne.s32.totalorder %s52, %s54
      %p61 = scmp.eq.s32.totalorder %s28, 1
      %p62 = por %p60, %p61
      %p63 = scmp.ne.s32.totalorder %s54, %s55
      %p64 = scmp.eq.s32.totalorder %s28, 0
      %p65 = por %p63, %p64
      %p66 = scmp.ne.s32.totalorder %s54, %s55
      %p67 = scmp.eq.s32.totalorder %s29, 1
      %p68 = por %p66, %p67
      %p70 = scmp.ne.s32.totalorder %s55, %s69
      %p71 = scmp.eq.s32.totalorder %s29, 0
      %p72 = por %p70, %p71
      %s74 = sadd.s32 %s73, 1
      %p77 = scmp.eq.s32.totalorder %s23, 1
      %p78 = scmp.ne.s32.totalorder %s73, %s75
      %p79 = scmp.eq.s32.totalorder %s23, 0
      %p80 = por %p78, %p79
      %p81 = scmp.ne.s32.totalorder %s73, %s75
      %p82 = scmp.eq.s32.totalorder %s28, 1
      %p83 = por %p81, %p82
      %p84 = scmp.ne.s32.totalorder %s75, %s76
      %p85 = scmp.eq.s32.totalorder %s28, 0
      %p86 = por %p84, %p85
      %p87 = scmp.ne.s32.totalorder %s75, %s76
      %p88 = scmp.eq.s32.totalorder %s29, 1
      %p89 = por %p87, %p88
      %p91 = scmp.ne.s32.totalorder %s76, %s90
      %p92 = scmp.eq.s32.totalorder %s29, 0
      %p93 = por %p91, %p92
      %s94 = ssub.s32 %s23, %s30
      %p95 = scmp.eq.s32.totalorder %s94, 0
      %s97 = sadd.s32 %s96, 1
      %s98 = scalar_select %p95, %s96, %s97
      %p101 = pneg %p95
      %p102 = scmp.eq.s32.totalorder %s23, 1
      %p103 = por %p101, %p102
      %p104 = scmp.ne.s32.totalorder %s96, %s99
      %p105 = scmp.eq.s32.totalorder %s23, 0
      %p106 = por %p104, %p105
      %p107 = scmp.ne.s32.totalorder %s96, %s99
      %p108 = scmp.eq.s32.totalorder %s28, 1
      %p109 = por %p107, %p108
      %p110 = scmp.ne.s32.totalorder %s99, %s100
      %p111 = scmp.eq.s32.totalorder %s28, 0
      %p112 = por %p110, %p111
      %p113 = scmp.ne.s32.totalorder %s99, %s100
      %p114 = scmp.eq.s32.totalorder %s29, 1
      %p115 = por %p113, %p114
      %p117 = scmp.ne.s32.totalorder %s100, %s116
      %p118 = scmp.eq.s32.totalorder %s29, 0
      %p119 = por %p117, %p118
      %p120 = scmp.le.s32.totalorder 1, %s23
      %p121 = scmp.lt.s32.totalorder %s23, 3
      %p122 = pnand %p120, %p121
      %p123 = pneg %p122
      // Predicated region
      $region9: #{tpu_custom_call.1} parent=5 // pred_check
        _
      $region10: #{tpu_custom_call.1} parent=5 // pred_check_branch
        %125 = sbr.rel (%p122) target = $region12
      $region11: #{tpu_custom_call.1} parent=5 // pred_region
        %s126 = ssub.s32 %s23, 1
        // Predicated region
        $region13: #{tpu_custom_call.1} parent=11 // pred_check
          %p127 = pneg %p44
        $region14: #{tpu_custom_call.1} parent=11 // pred_check_branch
          %129 = sbr.rel (%p127) target = $region16
        $region15: #{tpu_custom_call.1} parent=11 // pred_region
          %131 = vsyncadd [#allocation6], 0
          %s132 = sshll.u32 %s1, 4
          %s133 = int_to_ptr.hbm [resolvable:$true] %s132
          %s134 = sshll.u32 [#allocation5], 4
          %s135 = int_to_ptr.vmem [resolvable:$true] %s134
          %140 = dma.hbm_to_vmem [thread:$0]  %s133, 512, %s135, [#allocation6], 128, 128, 8
        $region16: #{tpu_custom_call.1} parent=11 // pred_fallthru
          _
        // Predicated region
        $region17: #{tpu_custom_call.1} parent=11 // pred_check
          %p141 = pneg %p65
        $region18: #{tpu_custom_call.1} parent=11 // pred_check_branch
          %143 = sbr.rel (%p141) target = $region20
        $region19: #{tpu_custom_call.1} parent=11 // pred_region
          %145 = vsyncadd [#allocation9], 0
          %s146 = sshll.u32 %s2, 4
          %s147 = int_to_ptr.hbm [resolvable:$true] %s146
          %s148 = sshll.u32 [#allocation8], 4
          %s149 = int_to_ptr.vmem [resolvable:$true] %s148
          %154 = dma.hbm_to_vmem [thread:$0]  %s147, 1024, %s149, [#allocation9], 64, 64, 4
        $region20: #{tpu_custom_call.1} parent=11 // pred_fallthru
          _
        // Predicated region
        $region21: #{tpu_custom_call.1} parent=11 // pred_check
          %p155 = pneg %p86
        $region22: #{tpu_custom_call.1} parent=11 // pred_check_branch
          %157 = sbr.rel (%p155) target = $region24
        $region23: #{tpu_custom_call.1} parent=11 // pred_region
          _
        $region24: #{tpu_custom_call.1} parent=11 // pred_fallthru
          _
      $region12: #{tpu_custom_call.1} parent=5 // pred_fallthru
        _
      %p158 = scmp.lt.s32.totalorder %s23, 2
      // Predicated region
      $region25: #{tpu_custom_call.1} parent=5 // pred_check
        %p159 = pneg %p158
      $region26: #{tpu_custom_call.1} parent=5 // pred_check_branch
        %161 = sbr.rel (%p159) target = $region28
      $region27: #{tpu_custom_call.1} parent=5 // pred_region
        _
      $region28: #{tpu_custom_call.1} parent=5 // pred_fallthru
        _
      %p162 = scmp.le.s32.totalorder 1, %s23
      %p163 = scmp.lt.s32.totalorder %s23, 3
      %p164 = pnand %p162, %p163
      %p165 = pneg %p164
      // Predicated region
      $region29: #{tpu_custom_call.1} parent=5 // pred_check
        _
      $region30: #{tpu_custom_call.1} parent=5 // pred_check_branch
        %167 = sbr.rel (%p164) target = $region32
      $region31: #{tpu_custom_call.1} parent=5 // pred_region
        %s168 = ssub.s32 %s23, 1
        // Predicated region
        $region33: #{tpu_custom_call.1} parent=31 // pred_check
          %p169 = pneg %p44
        $region34: #{tpu_custom_call.1} parent=31 // pred_check_branch
          %171 = sbr.rel (%p169) target = $region36
        $region35: #{tpu_custom_call.1} parent=31 // pred_region
          %173 = dma.done [#allocation6], 512
        $region36: #{tpu_custom_call.1} parent=31 // pred_fallthru
          _
        // Predicated region
        $region37: #{tpu_custom_call.1} parent=31 // pred_check
          %p174 = pneg %p65
        $region38: #{tpu_custom_call.1} parent=31 // pred_check_branch
          %176 = sbr.rel (%p174) target = $region40
        $region39: #{tpu_custom_call.1} parent=31 // pred_region
          %178 = dma.done [#allocation9], 1024
        $region40: #{tpu_custom_call.1} parent=31 // pred_fallthru
          _
        %p179 = pneg %p44
        %p180 = pneg %p41
        %p181 = pneg %p65
        %p182 = pneg %p62
        %p183 = pneg %p86
        %p184 = pneg %p83
        %p185 = pneg %p112
        %p186 = pneg %p109
        %s187 = sand.u32 %s99, 1
        %s188 = scalar_lea.sflag [#allocation7], %s187
        %s189 = sand.u32 %s99, 1
        %s190 = smul.addr %s189, 8
        %s191 = scalar_lea.vmem [#allocation10], %s190
        loop: start=0, step=1, limit=8
        $region41: #{tpu_custom_call.1} parent=31 // loop_pre_header
          _
        $region42: #{tpu_custom_call.1} parent=31 // loop_header
          %s193 = sphi 0, %s197
          %p194 = scmp.ge.s32.totalorder %s193, 8
        $region43: #{tpu_custom_call.1} parent=31 // loop_header_branch
          %196 = sbr.rel (%p194) target = $region47
        $region44: #{tpu_custom_call.1} parent=31 // loop_body
          %s198 = smul.u32 %s28, 8
          %s199 = sadd.s32 %s198, %s193
          %s200 = sld [smem:[#allocation4 + %s199]]
          %p201 = scmp.ge.s32.totalorder %s200, 0
          %p202 = scmp.lt.s32.totalorder %s200, 32
          %p203 = pnand %p201, %p202
          %p204 = pneg %p203
          %s205 = scalar_select %p204, 1, 0
          %s206 = scvt.s32.f32 %s205
          %p207 = scmp.gt.s32.totalorder %s200, 0
          %s208 = scalar_select %p207, %s200, 0
          %p209 = scmp.lt.s32.totalorder %s208, 31
          %s210 = scalar_select %p209, %s208, 31
          %s211 = scalar_lea.vmem [#allocation5], %s210
          %v212 = vld [vmem:[%s211] sm:$0x1]
          %v213 = vstv %s206
          %v214 = vmul.f32 %v212, %v213
          %s215 = scalar_lea.vmem [#allocation2], %s193
          %216 = vst [vmem:[%s215] sm:$0x1] %v214
        $region45: #{tpu_custom_call.1} parent=31 // loop_footer
          %s197 = sadd.s32 1, %s193
        $region46: #{tpu_custom_call.1} parent=31 // loop_footer_branch
          %192 = sbr.rel target = $region42
        $region47: #{tpu_custom_call.1} parent=31 // loop_exit
          _
        %v217 = vld [vmem:[#allocation2] sm:$0xff]
        %v218 = vpack.c.bf16 %v217, %v217
        %v219 = vld [vmem:[#allocation8] sm:$0xf]
        %v220 = vld [vmem:[#allocation8 + $0x4] sm:$0xf]
        %v221 = vld [vmem:[#allocation8 + $0x8] sm:$0xf]
        %v222 = vld [vmem:[#allocation8 + $0xc] sm:$0xf]
        %v223 = vld [vmem:[#allocation8 + $0x10] sm:$0xf]
        %v224 = vld [vmem:[#allocation8 + $0x14] sm:$0xf]
        %v225 = vld [vmem:[#allocation8 + $0x18] sm:$0xf]
        %v226 = vld [vmem:[#allocation8 + $0x1c] sm:$0xf]
        %v227 = vld [vmem:[#allocation8 + $0x20] sm:$0xf]
        %v228 = vld [vmem:[#allocation8 + $0x24] sm:$0xf]
        %v229 = vld [vmem:[#allocation8 + $0x28] sm:$0xf]
        %v230 = vld [vmem:[#allocation8 + $0x2c] sm:$0xf]
        %v231 = vld [vmem:[#allocation8 + $0x30] sm:$0xf]
        %v232 = vld [vmem:[#allocation8 + $0x34] sm:$0xf]
        %v233 = vld [vmem:[#allocation8 + $0x38] sm:$0xf]
        %v234 = vld [vmem:[#allocation8 + $0x3c] sm:$0xf]
        %v235 = vld [vmem:[%s3] sm:$0x1]
        %v237 = vperm.slane %v235, 0
        %v255 = vunpack.c.l.b16 %v219
        %v256 = vunpack.c.l.b16 %v220
        %v257 = vunpack.c.l.b16 %v221
        %v258 = vunpack.c.l.b16 %v222
        %v259 = vunpack.c.l.b16 %v223
        %v260 = vunpack.c.l.b16 %v224
        %v261 = vunpack.c.l.b16 %v225
        %v262 = vunpack.c.l.b16 %v226
        %v263 = vunpack.c.l.b16 %v227
        %v264 = vunpack.c.l.b16 %v228
        %v265 = vunpack.c.l.b16 %v229
        %v266 = vunpack.c.l.b16 %v230
        %v267 = vunpack.c.l.b16 %v231
        %v268 = vunpack.c.l.b16 %v232
        %v269 = vunpack.c.l.b16 %v233
        %v270 = vunpack.c.l.b16 %v234
        %v271 = vpack.c.b16 %v256, %v255
        %v272 = vpack.c.b16 %v258, %v257
        %v273 = vpack.c.b16 %v260, %v259
        %v274 = vpack.c.b16 %v262, %v261
        %v275 = vpack.c.b16 %v264, %v263
        %v276 = vpack.c.b16 %v266, %v265
        %v277 = vpack.c.b16 %v268, %v267
        %v278 = vpack.c.b16 %v270, %v269
        %287 = vmatpush.bf16.msra.mxu0 %v278
        %288 = vmatpush.bf16.msra.mxu0 %v277
        %289 = vmatpush.bf16.msra.mxu0 %v276
        %290 = vmatpush.bf16.msra.mxu0 %v275
        %291 = vmatpush.bf16.msra.mxu0 %v274
        %292 = vmatpush.bf16.msra.mxu0 %v273
        %293 = vmatpush.bf16.msra.mxu0 %v272
        %294 = vmatpush.bf16.msra.mxu0 %v271
        %295 = vmatmul.bf16.gmra.mxu0 %v218
        %v296 = vpop.f32.mrf.mxu0
        %v297 = vadd.f32 %v237, %v296
        %v298 = vpop.f32.mrf.mxu0
        %299 = vdwg.mxu0
        %300 = vst [vmem:[%s191] sm:$0xff] %v297
        %s301 = sand.u32 %s99, 1
        %s302 = scalar_lea.sflag [#allocation7], %s301
        %s303 = sand.u32 %s99, 1
        %s304 = smul.addr %s303, 8
        %s305 = scalar_lea.vmem [#allocation10], %s304
        // Predicated region
        $region48: #{tpu_custom_call.1} parent=31 // pred_check
          %p306 = pneg %p109
        $region49: #{tpu_custom_call.1} parent=31 // pred_check_branch
          %308 = sbr.rel (%p306) target = $region51
        $region50: #{tpu_custom_call.1} parent=31 // pred_region
          %310 = vsyncadd %s302, 0
          %s311 = smul.addr %s28, 8
          %s312 = scalar_lea.hbm %s4, %s311
          %s314 = sshll.u32 %s305, 4
          %s315 = int_to_ptr.vmem [resolvable:$true] %s314
          %s316 = sshll.u32 %s312, 4
          %s317 = int_to_ptr.hbm [resolvable:$true] %s316
          %319 = dma.vmem_to_hbm [thread:$0]  %s315, 128, %s317, %s302
        $region51: #{tpu_custom_call.1} parent=31 // pred_fallthru
          _
      $region32: #{tpu_custom_call.1} parent=5 // pred_fallthru
        _
      %p320 = scmp.le.s32.totalorder 2, %s23
      // Predicated region
      $region52: #{tpu_custom_call.1} parent=5 // pred_check
        %p321 = pneg %p320
      $region53: #{tpu_custom_call.1} parent=5 // pred_check_branch
        %323 = sbr.rel (%p321) target = $region55
      $region54: #{tpu_custom_call.1} parent=5 // pred_region
        %s324 = ssub.s32 %s23, 2
        // Predicated region
        $region56: #{tpu_custom_call.1} parent=54 // pred_check
          %p325 = pneg %p115
        $region57: #{tpu_custom_call.1} parent=54 // pred_check_branch
          %327 = sbr.rel (%p325) target = $region59
        $region58: #{tpu_custom_call.1} parent=54 // pred_region
          %s328 = sand.u32 %s100, 1
          %s329 = scalar_lea.sflag [#allocation7], %s328
          %s330 = sand.u32 %s100, 1
          %s331 = smul.addr %s330, 8
          %s332 = scalar_lea.vmem [#allocation10], %s331
          %334 = dma.done %s329, 128
        $region59: #{tpu_custom_call.1} parent=54 // pred_fallthru
          _
      $region55: #{tpu_custom_call.1} parent=5 // pred_fallthru
        _
    $region6: #{tpu_custom_call.1} parent=1 // loop_footer
      %s27 = sadd.s32 1, %s23
    $region7: #{tpu_custom_call.1} parent=1 // loop_footer_branch
      %22 = sbr.rel target = $region3
    $region8: #{tpu_custom_call.1} parent=1 // loop_exit
      _
    %335 = vsyncpa [#allocation6], 1
    %s336 = scalar_lea.sflag [#allocation6], 1
    %337 = vsyncpa %s336, 1
    %338 = vsyncpa [#allocation9], 1
    %339 = vsyncpa [#allocation7], 1
    %s340 = scalar_lea.sflag [#allocation7], 1
    %341 = vsyncpa %s340, 1

</llo_original>
